<compile_context>
chip_gen: v7x
topology: tpu7x:2x2x1
jax: 0.10.0
libtpu: 0.0.40
codegen_flags: <defaults>
</compile_context>

<pallas_src>
import jax
import jax.numpy as jnp
from jax import lax
from jax.experimental import pallas as pl
from jax.experimental.pallas import tpu as pltpu


def _length_regulator_kernel(tot_ref, cs_t_ref, out_ref):
    """One speech-frame tile, all batch rows.

    tot_ref:  (B_pad,)       int32 SMEM  per-row total frames (cumsum[:, -1])
    cs_t_ref: (T_txt, B_pad) int32 VMEM  inclusive cumsum, column layout
    out_ref:  (B_pad, TN)    int32 VMEM  mel2ph tile covering [n*TN, (n+1)*TN)
    """
    n = pl.program_id(0)
    T_txt, B_pad = cs_t_ref.shape
    tn = out_ref.shape[1]
    start = n * tn

    # Frame positions covered by this tile.
    pos = lax.broadcasted_iota(jnp.int32, (1, tn), 1) + start        # (1, TN)

    for r in range(B_pad):                       # B_pad is small & static
        total_r = tot_ref[r]                     # SMEM scalar

        # Row ends before this tile (or is a batch-padding row): write zeros.
        @pl.when(start >= total_r)
        def _(r=r):
            out_ref[pl.ds(r, 1), :] = jnp.zeros((1, tn), jnp.int32)

        # Row is live in this tile: searchsorted-style count.
        @pl.when(start < total_r)
        def _(r=r, total_r=total_r):
            cs_col = cs_t_ref[:, r:r + 1]                            # (T_txt, 1)
            cnt = jnp.sum((cs_col <= pos).astype(jnp.int32),
                          axis=0, keepdims=True)                     # (1, TN)
            out_ref[pl.ds(r, 1), :] = jnp.where(pos < total_r, cnt + 1, 0)


def _round_up(x, m):
    return ((x + m - 1) // m) * m


def length_regulator(dur, dur_padding=None, alpha=1.0, pad_value=0.0,
                     max_tile=2048):
    """JAX/Pallas equivalent of LengthRegulator.forward.

    dur:         (B, T_txt) durations (any numeric dtype)
    dur_padding: (B, T_txt) optional 0/1 padding mask
    returns:     (B, T_mel) int32 mel2ph, T_mel = max(sum(round(dur*alpha)))
    """
    assert alpha > 0
    B, T_txt = dur.shape

    # round(dur * alpha), zero-out padded tokens, inclusive cumsum — all cheap
    # XLA ops in the wrapper; the kernel only does the O(T_txt * T_mel) count.
    dur_r = jnp.round(dur.astype(jnp.float32) * alpha).astype(jnp.int32)
    if dur_padding is not None:
        dur_r = dur_r * (1 - dur_padding.astype(jnp.int32))
    cumsum = jnp.cumsum(dur_r, axis=1)            # (B, T_txt) inclusive
    totals = cumsum[:, -1]                        # (B,)

    # Data-dependent output length -> must be a concrete Python int for the
    # static Pallas output shape.
    # TODO(synk): host sync breaks jax.jit; callers wanting a jit-able path
    # should pass a bucketed static max length instead.
    T_mel = int(jnp.max(totals))
    if T_mel <= 0:
        return jnp.zeros((B, 0), jnp.int32)

    # Pad batch to a multiple of 8 so the output block is sublane-dense.
    # Padded rows get total=0 -> all-zero output; sliced off below.
    B_pad = _round_up(B, 8)
    if B_pad != B:
        cumsum = jnp.pad(cumsum, ((0, B_pad - B), (0, 0)))
        totals = jnp.pad(totals, (0, B_pad - B))
    cs_t = jnp.transpose(cumsum)                  # (T_txt, B_pad) column layout

    # Tile width: multiple of 128 (lane-dense stores), as large as possible to
    # amortize per-grid-step overhead, but capped so the per-row (T_txt, TN)
    # compare intermediate stays ~<= 4 MiB (safe on v7x's smaller VMEM).
    budget_elems = (4 * 1024 * 1024) // 4
    tile_cap = max(128, ((budget_elems // max(T_txt, 1)) // 128) * 128)
    tile_n = max(128, min(max_tile, tile_cap, _round_up(T_mel, 128)))
    n_tiles = pl.cdiv(T_mel, tile_n)
    T_mel_pad = n_tiles * tile_n

    out = pl.pallas_call(
        _length_regulator_kernel,
        out_shape=jax.ShapeDtypeStruct((B_pad, T_mel_pad), jnp.int32),
        grid_spec=pltpu.PrefetchScalarGridSpec(
            num_scalar_prefetch=1,                # totals -> SMEM
            grid=(n_tiles,),
            in_specs=[
                # full transposed cumsum every step (tiny; DMA skipped on
                # revisits since the block index never changes)
                pl.BlockSpec((T_txt, B_pad), lambda n, tot: (0, 0)),
            ],
            out_specs=pl.BlockSpec((B_pad, tile_n), lambda n, tot: (0, n)),
        ),
        compiler_params=pltpu.CompilerParams(
            dimension_semantics=("parallel",)),
    )(totals, cs_t)

    return out[:B, :T_mel]


def _reference(dur, dur_padding, alpha):
    """Pure-JAX port of the torch forward for verification."""
    B, T_txt = dur.shape
    dur_r = jnp.round(dur.astype(jnp.float32) * alpha).astype(jnp.int32)
    if dur_padding is not None:
        dur_r = dur_r * (1 - dur_padding.astype(jnp.int32))
    cumsum = jnp.cumsum(dur_r, axis=1)
    prev = jnp.concatenate(
        [jnp.zeros((B, 1), jnp.int32), cumsum[:, :-1]], axis=1)
    T_mel = int(jnp.max(cumsum[:, -1]))
    pos = jnp.arange(T_mel, dtype=jnp.int32)[None, None, :]
    tok = jnp.arange(1, T_txt + 1, dtype=jnp.int32)[None, :, None]
    mask = (pos >= prev[:, :, None]) & (pos < cumsum[:, :, None])
    return jnp.sum(tok * mask.astype(jnp.int32), axis=1)


if __name__ == "__main__":
    key = jax.random.PRNGKey(0)
    k1, k2 = jax.random.split(key)

    B, T_txt = 2, 8
    # durations 1..4 (float, as the module rounds floats), a few padded tokens
    dur = jax.random.randint(k1, (B, T_txt), 1, 5).astype(jnp.float32)
    dur_padding = (jax.random.uniform(k2, (B, T_txt)) < 0.25).astype(jnp.int32)
    alpha = 1.0

    mel2ph = length_regulator(dur, dur_padding, alpha)
    mel2ph = jax.block_until_ready(mel2ph)

    ref = _reference(dur, dur_padding, alpha)
    assert mel2ph.shape == ref.shape, (mel2ph.shape, ref.shape)
    assert bool(jnp.all(mel2ph == ref)), "mismatch vs reference"

    print("KERNEL_OK")
</pallas_src>

<mosaic_0001>
module attributes {stable_mosaic.version = 11 : i64} {
  func.func @_length_regulator_kernel(%arg0: i32, %arg1: memref<8xi32, #tpu.memory_space<smem>>, %arg2: memref<8x8xi32, #tpu.memory_space<vmem>>, %arg3: memref<8x128xi32, #tpu.memory_space<vmem>>) attributes {dimension_semantics = [#tpu.dimension_semantics<parallel>], iteration_bounds = array<i64: 1>, scalar_prefetch = 1 : i64, scratch_operands = 0 : i64, tpu.core_type = #tpu.core_type<tc>, window_params = [{pipeline_mode = #tpu.pipeline_mode<synchronous>, transform_indices = @transform_0, window_bounds = array<i64: 8, 8>}, {transform_indices = @transform_1, window_bounds = array<i64: 8, 128>}]} {
    %c128_i32 = arith.constant 128 : i32
    %0 = arith.muli %arg0, %c128_i32 : i32
    %1 = tpu.iota {dimensions = array<i32: 1>} : vector<1x128xi32>
    %2 = vector.broadcast %0 : i32 to vector<1x128xi32>
    %3 = arith.addi %1, %2 : vector<1x128xi32>
    %c0 = arith.constant 0 : index
    %4 = memref.load %arg1[%c0] : memref<8xi32, #tpu.memory_space<smem>>
    %5 = arith.cmpi sge, %0, %4 : i32
    %6 = arith.extui %5 : i1 to i32
    %c0_i32 = arith.constant 0 : i32
    %7 = arith.cmpi ne, %6, %c0_i32 : i32
    scf.if %7 {
      %c0_i32_15 = arith.constant 0 : i32
      %60 = vector.broadcast %c0_i32_15 : i32 to vector<1x128xi32>
      %c0_16 = arith.constant 0 : index
      %c0_17 = arith.constant 0 : index
      %61 = vector.load %arg3[%c0_16, %c0_17] : memref<8x128xi32, #tpu.memory_space<vmem>>, vector<1x128xi32>
      tpu.vector_store %arg3[%c0_16, %c0_17], %60 {strides = array<i32>} : memref<8x128xi32, #tpu.memory_space<vmem>>, vector<1x128xi32>,
    } else {
    }
    %8 = arith.cmpi slt, %0, %4 : i32
    %9 = arith.extui %8 : i1 to i32
    %c0_i32_0 = arith.constant 0 : i32
    %10 = arith.cmpi ne, %9, %c0_i32_0 : i32
    scf.if %10 {
      %c0_15 = arith.constant 0 : index
      %c0_16 = arith.constant 0 : index
      %60 = vector.load %arg2[%c0_15, %c0_16] : memref<8x8xi32, #tpu.memory_space<vmem>>, vector<8x1xi32>
      %61 = vector.broadcast %60 : vector<8x1xi32> to vector<8x128xi32>
      %62 = vector.broadcast %3 : vector<1x128xi32> to vector<8x128xi32>
      %63 = arith.cmpi sle, %61, %62 : vector<8x128xi32>
      %64 = arith.extui %63 : vector<8x128xi1> to vector<8x128xi32>
      %cst = arith.constant dense<0> : vector<128xi32>
      %65 = vector.multi_reduction <add>, %64, %cst [0] : vector<8x128xi32> to vector<128xi32>
      %66 = vector.shape_cast %65 : vector<128xi32> to vector<1x128xi32>
      %67 = vector.broadcast %4 : i32 to vector<1x128xi32>
      %68 = arith.cmpi slt, %3, %67 : vector<1x128xi32>
      %c1_i32 = arith.constant 1 : i32
      %69 = vector.broadcast %c1_i32 : i32 to vector<1x128xi32>
      %70 = arith.addi %66, %69 : vector<1x128xi32>
      %c0_i32_17 = arith.constant 0 : i32
      %71 = vector.broadcast %c0_i32_17 : i32 to vector<1x128xi32>
      %72 = arith.select %68, %70, %71 : vector<1x128xi1>, vector<1x128xi32>
      %c0_18 = arith.constant 0 : index
      %c0_19 = arith.constant 0 : index
      %73 = vector.load %arg3[%c0_18, %c0_19] : memref<8x128xi32, #tpu.memory_space<vmem>>, vector<1x128xi32>
      tpu.vector_store %arg3[%c0_18, %c0_19], %72 {strides = array<i32>} : memref<8x128xi32, #tpu.memory_space<vmem>>, vector<1x128xi32>,
    } else {
    }
    %c1 = arith.constant 1 : index
    %11 = memref.load %arg1[%c1] : memref<8xi32, #tpu.memory_space<smem>>
    %12 = arith.cmpi sge, %0, %11 : i32
    %13 = arith.extui %12 : i1 to i32
    %c0_i32_1 = arith.constant 0 : i32
    %14 = arith.cmpi ne, %13, %c0_i32_1 : i32
    scf.if %14 {
      %c0_i32_15 = arith.constant 0 : i32
      %60 = vector.broadcast %c0_i32_15 : i32 to vector<1x128xi32>
      %c1_16 = arith.constant 1 : index
      %c0_17 = arith.constant 0 : index
      %61 = vector.load %arg3[%c1_16, %c0_17] : memref<8x128xi32, #tpu.memory_space<vmem>>, vector<1x128xi32>
      tpu.vector_store %arg3[%c1_16, %c0_17], %60 {strides = array<i32>} : memref<8x128xi32, #tpu.memory_space<vmem>>, vector<1x128xi32>,
    } else {
    }
    %15 = arith.cmpi slt, %0, %11 : i32
    %16 = arith.extui %15 : i1 to i32
    %c0_i32_2 = arith.constant 0 : i32
    %17 = arith.cmpi ne, %16, %c0_i32_2 : i32
    scf.if %17 {
      %c0_15 = arith.constant 0 : index
      %c1_16 = arith.constant 1 : index
      %60 = vector.load %arg2[%c0_15, %c1_16] : memref<8x8xi32, #tpu.memory_space<vmem>>, vector<8x1xi32>
      %61 = vector.broadcast %60 : vector<8x1xi32> to vector<8x128xi32>
      %62 = vector.broadcast %3 : vector<1x128xi32> to vector<8x128xi32>
      %63 = arith.cmpi sle, %61, %62 : vector<8x128xi32>
      %64 = arith.extui %63 : vector<8x128xi1> to vector<8x128xi32>
      %cst = arith.constant dense<0> : vector<128xi32>
      %65 = vector.multi_reduction <add>, %64, %cst [0] : vector<8x128xi32> to vector<128xi32>
      %66 = vector.shape_cast %65 : vector<128xi32> to vector<1x128xi32>
      %67 = vector.broadcast %11 : i32 to vector<1x128xi32>
      %68 = arith.cmpi slt, %3, %67 : vector<1x128xi32>
      %c1_i32 = arith.constant 1 : i32
      %69 = vector.broadcast %c1_i32 : i32 to vector<1x128xi32>
      %70 = arith.addi %66, %69 : vector<1x128xi32>
      %c0_i32_17 = arith.constant 0 : i32
      %71 = vector.broadcast %c0_i32_17 : i32 to vector<1x128xi32>
      %72 = arith.select %68, %70, %71 : vector<1x128xi1>, vector<1x128xi32>
      %c1_18 = arith.constant 1 : index
      %c0_19 = arith.constant 0 : index
      %73 = vector.load %arg3[%c1_18, %c0_19] : memref<8x128xi32, #tpu.memory_space<vmem>>, vector<1x128xi32>
      tpu.vector_store %arg3[%c1_18, %c0_19], %72 {strides = array<i32>} : memref<8x128xi32, #tpu.memory_space<vmem>>, vector<1x128xi32>,
    } else {
    }
    %c2 = arith.constant 2 : index
    %18 = memref.load %arg1[%c2] : memref<8xi32, #tpu.memory_space<smem>>
    %19 = arith.cmpi sge, %0, %18 : i32
    %20 = arith.extui %19 : i1 to i32
    %c0_i32_3 = arith.constant 0 : i32
    %21 = arith.cmpi ne, %20, %c0_i32_3 : i32
    scf.if %21 {
      %c0_i32_15 = arith.constant 0 : i32
      %60 = vector.broadcast %c0_i32_15 : i32 to vector<1x128xi32>
      %c2_16 = arith.constant 2 : index
      %c0_17 = arith.constant 0 : index
      %61 = vector.load %arg3[%c2_16, %c0_17] : memref<8x128xi32, #tpu.memory_space<vmem>>, vector<1x128xi32>
      tpu.vector_store %arg3[%c2_16, %c0_17], %60 {strides = array<i32>} : memref<8x128xi32, #tpu.memory_space<vmem>>, vector<1x128xi32>,
    } else {
    }
    %22 = arith.cmpi slt, %0, %18 : i32
    %23 = arith.extui %22 : i1 to i32
    %c0_i32_4 = arith.constant 0 : i32
    %24 = arith.cmpi ne, %23, %c0_i32_4 : i32
    scf.if %24 {
      %c0_15 = arith.constant 0 : index
      %c2_16 = arith.constant 2 : index
      %60 = vector.load %arg2[%c0_15, %c2_16] : memref<8x8xi32, #tpu.memory_space<vmem>>, vector<8x1xi32>
      %61 = vector.broadcast %60 : vector<8x1xi32> to vector<8x128xi32>
      %62 = vector.broadcast %3 : vector<1x128xi32> to vector<8x128xi32>
      %63 = arith.cmpi sle, %61, %62 : vector<8x128xi32>
      %64 = arith.extui %63 : vector<8x128xi1> to vector<8x128xi32>
      %cst = arith.constant dense<0> : vector<128xi32>
      %65 = vector.multi_reduction <add>, %64, %cst [0] : vector<8x128xi32> to vector<128xi32>
      %66 = vector.shape_cast %65 : vector<128xi32> to vector<1x128xi32>
      %67 = vector.broadcast %18 : i32 to vector<1x128xi32>
      %68 = arith.cmpi slt, %3, %67 : vector<1x128xi32>
      %c1_i32 = arith.constant 1 : i32
      %69 = vector.broadcast %c1_i32 : i32 to vector<1x128xi32>
      %70 = arith.addi %66, %69 : vector<1x128xi32>
      %c0_i32_17 = arith.constant 0 : i32
      %71 = vector.broadcast %c0_i32_17 : i32 to vector<1x128xi32>
      %72 = arith.select %68, %70, %71 : vector<1x128xi1>, vector<1x128xi32>
      %c2_18 = arith.constant 2 : index
      %c0_19 = arith.constant 0 : index
      %73 = vector.load %arg3[%c2_18, %c0_19] : memref<8x128xi32, #tpu.memory_space<vmem>>, vector<1x128xi32>
      tpu.vector_store %arg3[%c2_18, %c0_19], %72 {strides = array<i32>} : memref<8x128xi32, #tpu.memory_space<vmem>>, vector<1x128xi32>,
    } else {
    }
    %c3 = arith.constant 3 : index
    %25 = memref.load %arg1[%c3] : memref<8xi32, #tpu.memory_space<smem>>
    %26 = arith.cmpi sge, %0, %25 : i32
    %27 = arith.extui %26 : i1 to i32
    %c0_i32_5 = arith.constant 0 : i32
    %28 = arith.cmpi ne, %27, %c0_i32_5 : i32
    scf.if %28 {
      %c0_i32_15 = arith.constant 0 : i32
      %60 = vector.broadcast %c0_i32_15 : i32 to vector<1x128xi32>
      %c3_16 = arith.constant 3 : index
      %c0_17 = arith.constant 0 : index
      %61 = vector.load %arg3[%c3_16, %c0_17] : memref<8x128xi32, #tpu.memory_space<vmem>>, vector<1x128xi32>
      tpu.vector_store %arg3[%c3_16, %c0_17], %60 {strides = array<i32>} : memref<8x128xi32, #tpu.memory_space<vmem>>, vector<1x128xi32>,
    } else {
    }
    %29 = arith.cmpi slt, %0, %25 : i32
    %30 = arith.extui %29 : i1 to i32
    %c0_i32_6 = arith.constant 0 : i32
    %31 = arith.cmpi ne, %30, %c0_i32_6 : i32
    scf.if %31 {
      %c0_15 = arith.constant 0 : index
      %c3_16 = arith.constant 3 : index
      %60 = vector.load %arg2[%c0_15, %c3_16] : memref<8x8xi32, #tpu.memory_space<vmem>>, vector<8x1xi32>
      %61 = vector.broadcast %60 : vector<8x1xi32> to vector<8x128xi32>
      %62 = vector.broadcast %3 : vector<1x128xi32> to vector<8x128xi32>
      %63 = arith.cmpi sle, %61, %62 : vector<8x128xi32>
      %64 = arith.extui %63 : vector<8x128xi1> to vector<8x128xi32>
      %cst = arith.constant dense<0> : vector<128xi32>
      %65 = vector.multi_reduction <add>, %64, %cst [0] : vector<8x128xi32> to vector<128xi32>
      %66 = vector.shape_cast %65 : vector<128xi32> to vector<1x128xi32>
      %67 = vector.broadcast %25 : i32 to vector<1x128xi32>
      %68 = arith.cmpi slt, %3, %67 : vector<1x128xi32>
      %c1_i32 = arith.constant 1 : i32
      %69 = vector.broadcast %c1_i32 : i32 to vector<1x128xi32>
      %70 = arith.addi %66, %69 : vector<1x128xi32>
      %c0_i32_17 = arith.constant 0 : i32
      %71 = vector.broadcast %c0_i32_17 : i32 to vector<1x128xi32>
      %72 = arith.select %68, %70, %71 : vector<1x128xi1>, vector<1x128xi32>
      %c3_18 = arith.constant 3 : index
      %c0_19 = arith.constant 0 : index
      %73 = vector.load %arg3[%c3_18, %c0_19] : memref<8x128xi32, #tpu.memory_space<vmem>>, vector<1x128xi32>
      tpu.vector_store %arg3[%c3_18, %c0_19], %72 {strides = array<i32>} : memref<8x128xi32, #tpu.memory_space<vmem>>, vector<1x128xi32>,
    } else {
    }
    %c4 = arith.constant 4 : index
    %32 = memref.load %arg1[%c4] : memref<8xi32, #tpu.memory_space<smem>>
    %33 = arith.cmpi sge, %0, %32 : i32
    %34 = arith.extui %33 : i1 to i32
    %c0_i32_7 = arith.constant 0 : i32
    %35 = arith.cmpi ne, %34, %c0_i32_7 : i32
    scf.if %35 {
      %c0_i32_15 = arith.constant 0 : i32
      %60 = vector.broadcast %c0_i32_15 : i32 to vector<1x128xi32>
      %c4_16 = arith.constant 4 : index
      %c0_17 = arith.constant 0 : index
      %61 = vector.load %arg3[%c4_16, %c0_17] : memref<8x128xi32, #tpu.memory_space<vmem>>, vector<1x128xi32>
      tpu.vector_store %arg3[%c4_16, %c0_17], %60 {strides = array<i32>} : memref<8x128xi32, #tpu.memory_space<vmem>>, vector<1x128xi32>,
    } else {
    }
    %36 = arith.cmpi slt, %0, %32 : i32
    %37 = arith.extui %36 : i1 to i32
    %c0_i32_8 = arith.constant 0 : i32
    %38 = arith.cmpi ne, %37, %c0_i32_8 : i32
    scf.if %38 {
      %c0_15 = arith.constant 0 : index
      %c4_16 = arith.constant 4 : index
      %60 = vector.load %arg2[%c0_15, %c4_16] : memref<8x8xi32, #tpu.memory_space<vmem>>, vector<8x1xi32>
      %61 = vector.broadcast %60 : vector<8x1xi32> to vector<8x128xi32>
      %62 = vector.broadcast %3 : vector<1x128xi32> to vector<8x128xi32>
      %63 = arith.cmpi sle, %61, %62 : vector<8x128xi32>
      %64 = arith.extui %63 : vector<8x128xi1> to vector<8x128xi32>
      %cst = arith.constant dense<0> : vector<128xi32>
      %65 = vector.multi_reduction <add>, %64, %cst [0] : vector<8x128xi32> to vector<128xi32>
      %66 = vector.shape_cast %65 : vector<128xi32> to vector<1x128xi32>
      %67 = vector.broadcast %32 : i32 to vector<1x128xi32>
      %68 = arith.cmpi slt, %3, %67 : vector<1x128xi32>
      %c1_i32 = arith.constant 1 : i32
      %69 = vector.broadcast %c1_i32 : i32 to vector<1x128xi32>
      %70 = arith.addi %66, %69 : vector<1x128xi32>
      %c0_i32_17 = arith.constant 0 : i32
      %71 = vector.broadcast %c0_i32_17 : i32 to vector<1x128xi32>
      %72 = arith.select %68, %70, %71 : vector<1x128xi1>, vector<1x128xi32>
      %c4_18 = arith.constant 4 : index
      %c0_19 = arith.constant 0 : index
      %73 = vector.load %arg3[%c4_18, %c0_19] : memref<8x128xi32, #tpu.memory_space<vmem>>, vector<1x128xi32>
      tpu.vector_store %arg3[%c4_18, %c0_19], %72 {strides = array<i32>} : memref<8x128xi32, #tpu.memory_space<vmem>>, vector<1x128xi32>,
    } else {
    }
    %c5 = arith.constant 5 : index
    %39 = memref.load %arg1[%c5] : memref<8xi32, #tpu.memory_space<smem>>
    %40 = arith.cmpi sge, %0, %39 : i32
    %41 = arith.extui %40 : i1 to i32
    %c0_i32_9 = arith.constant 0 : i32
    %42 = arith.cmpi ne, %41, %c0_i32_9 : i32
    scf.if %42 {
      %c0_i32_15 = arith.constant 0 : i32
      %60 = vector.broadcast %c0_i32_15 : i32 to vector<1x128xi32>
      %c5_16 = arith.constant 5 : index
      %c0_17 = arith.constant 0 : index
      %61 = vector.load %arg3[%c5_16, %c0_17] : memref<8x128xi32, #tpu.memory_space<vmem>>, vector<1x128xi32>
      tpu.vector_store %arg3[%c5_16, %c0_17], %60 {strides = array<i32>} : memref<8x128xi32, #tpu.memory_space<vmem>>, vector<1x128xi32>,
    } else {
    }
    %43 = arith.cmpi slt, %0, %39 : i32
    %44 = arith.extui %43 : i1 to i32
    %c0_i32_10 = arith.constant 0 : i32
    %45 = arith.cmpi ne, %44, %c0_i32_10 : i32
    scf.if %45 {
      %c0_15 = arith.constant 0 : index
      %c5_16 = arith.constant 5 : index
      %60 = vector.load %arg2[%c0_15, %c5_16] : memref<8x8xi32, #tpu.memory_space<vmem>>, vector<8x1xi32>
      %61 = vector.broadcast %60 : vector<8x1xi32> to vector<8x128xi32>
      %62 = vector.broadcast %3 : vector<1x128xi32> to vector<8x128xi32>
      %63 = arith.cmpi sle, %61, %62 : vector<8x128xi32>
      %64 = arith.extui %63 : vector<8x128xi1> to vector<8x128xi32>
      %cst = arith.constant dense<0> : vector<128xi32>
      %65 = vector.multi_reduction <add>, %64, %cst [0] : vector<8x128xi32> to vector<128xi32>
      %66 = vector.shape_cast %65 : vector<128xi32> to vector<1x128xi32>
      %67 = vector.broadcast %39 : i32 to vector<1x128xi32>
      %68 = arith.cmpi slt, %3, %67 : vector<1x128xi32>
      %c1_i32 = arith.constant 1 : i32
      %69 = vector.broadcast %c1_i32 : i32 to vector<1x128xi32>
      %70 = arith.addi %66, %69 : vector<1x128xi32>
      %c0_i32_17 = arith.constant 0 : i32
      %71 = vector.broadcast %c0_i32_17 : i32 to vector<1x128xi32>
      %72 = arith.select %68, %70, %71 : vector<1x128xi1>, vector<1x128xi32>
      %c5_18 = arith.constant 5 : index
      %c0_19 = arith.constant 0 : index
      %73 = vector.load %arg3[%c5_18, %c0_19] : memref<8x128xi32, #tpu.memory_space<vmem>>, vector<1x128xi32>
      tpu.vector_store %arg3[%c5_18, %c0_19], %72 {strides = array<i32>} : memref<8x128xi32, #tpu.memory_space<vmem>>, vector<1x128xi32>,
    } else {
    }
    %c6 = arith.constant 6 : index
    %46 = memref.load %arg1[%c6] : memref<8xi32, #tpu.memory_space<smem>>
    %47 = arith.cmpi sge, %0, %46 : i32
    %48 = arith.extui %47 : i1 to i32
    %c0_i32_11 = arith.constant 0 : i32
    %49 = arith.cmpi ne, %48, %c0_i32_11 : i32
    scf.if %49 {
      %c0_i32_15 = arith.constant 0 : i32
      %60 = vector.broadcast %c0_i32_15 : i32 to vector<1x128xi32>
      %c6_16 = arith.constant 6 : index
      %c0_17 = arith.constant 0 : index
      %61 = vector.load %arg3[%c6_16, %c0_17] : memref<8x128xi32, #tpu.memory_space<vmem>>, vector<1x128xi32>
      tpu.vector_store %arg3[%c6_16, %c0_17], %60 {strides = array<i32>} : memref<8x128xi32, #tpu.memory_space<vmem>>, vector<1x128xi32>,
    } else {
    }
    %50 = arith.cmpi slt, %0, %46 : i32
    %51 = arith.extui %50 : i1 to i32
    %c0_i32_12 = arith.constant 0 : i32
    %52 = arith.cmpi ne, %51, %c0_i32_12 : i32
    scf.if %52 {
      %c0_15 = arith.constant 0 : index
      %c6_16 = arith.constant 6 : index
      %60 = vector.load %arg2[%c0_15, %c6_16] : memref<8x8xi32, #tpu.memory_space<vmem>>, vector<8x1xi32>
      %61 = vector.broadcast %60 : vector<8x1xi32> to vector<8x128xi32>
      %62 = vector.broadcast %3 : vector<1x128xi32> to vector<8x128xi32>
      %63 = arith.cmpi sle, %61, %62 : vector<8x128xi32>
      %64 = arith.extui %63 : vector<8x128xi1> to vector<8x128xi32>
      %cst = arith.constant dense<0> : vector<128xi32>
      %65 = vector.multi_reduction <add>, %64, %cst [0] : vector<8x128xi32> to vector<128xi32>
      %66 = vector.shape_cast %65 : vector<128xi32> to vector<1x128xi32>
      %67 = vector.broadcast %46 : i32 to vector<1x128xi32>
      %68 = arith.cmpi slt, %3, %67 : vector<1x128xi32>
      %c1_i32 = arith.constant 1 : i32
      %69 = vector.broadcast %c1_i32 : i32 to vector<1x128xi32>
      %70 = arith.addi %66, %69 : vector<1x128xi32>
      %c0_i32_17 = arith.constant 0 : i32
      %71 = vector.broadcast %c0_i32_17 : i32 to vector<1x128xi32>
      %72 = arith.select %68, %70, %71 : vector<1x128xi1>, vector<1x128xi32>
      %c6_18 = arith.constant 6 : index
      %c0_19 = arith.constant 0 : index
      %73 = vector.load %arg3[%c6_18, %c0_19] : memref<8x128xi32, #tpu.memory_space<vmem>>, vector<1x128xi32>
      tpu.vector_store %arg3[%c6_18, %c0_19], %72 {strides = array<i32>} : memref<8x128xi32, #tpu.memory_space<vmem>>, vector<1x128xi32>,
    } else {
    }
    %c7 = arith.constant 7 : index
    %53 = memref.load %arg1[%c7] : memref<8xi32, #tpu.memory_space<smem>>
    %54 = arith.cmpi sge, %0, %53 : i32
    %55 = arith.extui %54 : i1 to i32
    %c0_i32_13 = arith.constant 0 : i32
    %56 = arith.cmpi ne, %55, %c0_i32_13 : i32
    scf.if %56 {
      %c0_i32_15 = arith.constant 0 : i32
      %60 = vector.broadcast %c0_i32_15 : i32 to vector<1x128xi32>
      %c7_16 = arith.constant 7 : index
      %c0_17 = arith.constant 0 : index
      %61 = vector.load %arg3[%c7_16, %c0_17] : memref<8x128xi32, #tpu.memory_space<vmem>>, vector<1x128xi32>
      tpu.vector_store %arg3[%c7_16, %c0_17], %60 {strides = array<i32>} : memref<8x128xi32, #tpu.memory_space<vmem>>, vector<1x128xi32>,
    } else {
    }
    %57 = arith.cmpi slt, %0, %53 : i32
    %58 = arith.extui %57 : i1 to i32
    %c0_i32_14 = arith.constant 0 : i32
    %59 = arith.cmpi ne, %58, %c0_i32_14 : i32
    scf.if %59 {
      %c0_15 = arith.constant 0 : index
      %c7_16 = arith.constant 7 : index
      %60 = vector.load %arg2[%c0_15, %c7_16] : memref<8x8xi32, #tpu.memory_space<vmem>>, vector<8x1xi32>
      %61 = vector.broadcast %60 : vector<8x1xi32> to vector<8x128xi32>
      %62 = vector.broadcast %3 : vector<1x128xi32> to vector<8x128xi32>
      %63 = arith.cmpi sle, %61, %62 : vector<8x128xi32>
      %64 = arith.extui %63 : vector<8x128xi1> to vector<8x128xi32>
      %cst = arith.constant dense<0> : vector<128xi32>
      %65 = vector.multi_reduction <add>, %64, %cst [0] : vector<8x128xi32> to vector<128xi32>
      %66 = vector.shape_cast %65 : vector<128xi32> to vector<1x128xi32>
      %67 = vector.broadcast %53 : i32 to vector<1x128xi32>
      %68 = arith.cmpi slt, %3, %67 : vector<1x128xi32>
      %c1_i32 = arith.constant 1 : i32
      %69 = vector.broadcast %c1_i32 : i32 to vector<1x128xi32>
      %70 = arith.addi %66, %69 : vector<1x128xi32>
      %c0_i32_17 = arith.constant 0 : i32
      %71 = vector.broadcast %c0_i32_17 : i32 to vector<1x128xi32>
      %72 = arith.select %68, %70, %71 : vector<1x128xi1>, vector<1x128xi32>
      %c7_18 = arith.constant 7 : index
      %c0_19 = arith.constant 0 : index
      %73 = vector.load %arg3[%c7_18, %c0_19] : memref<8x128xi32, #tpu.memory_space<vmem>>, vector<1x128xi32>
      tpu.vector_store %arg3[%c7_18, %c0_19], %72 {strides = array<i32>} : memref<8x128xi32, #tpu.memory_space<vmem>>, vector<1x128xi32>,
    } else {
    }
    return
  }
  func.func @transform_0(%arg0: i32, %arg1: memref<8xi32, #tpu.memory_space<smem>>) -> (i32, i32) {
    %c0_i32 = arith.constant 0 : i32
    %c0_i32_0 = arith.constant 0 : i32
    %c0_i32_1 = arith.constant 0 : i32
    return %c0_i32, %c0_i32_0 : i32, i32
  }
  func.func @transform_1(%arg0: i32, %arg1: memref<8xi32, #tpu.memory_space<smem>>) -> (i32, i32) {
    %c0_i32 = arith.constant 0 : i32
    %c0_i32_0 = arith.constant 0 : i32
    return %c0_i32, %arg0 : i32, i32
  }
}

</mosaic_0001>

<llo_original>
// kernel: tpu_custom_call.1
$region0: #{tpu_custom_call.1}
  #allocation0 [shape = 'u32[]', space=smem, size = 0x4, offset = 0x4, fixed_abs, tag = 'smem constant byte address 0x4 - core index']
  #allocation1 [shape = 'u32[144,128]{1,0:T(1,128)}', space=vmem, size = 0x12000, scoped, tag = 'internal scratch']
  #allocation2 [shape = 's32[1]{0}', space=sflag, size = 0x4, scoped, tag = 'scoped memory for tpu_custom_call.1']
  #allocation3 [shape = 'u8[512]{0}', space=smem, size = 0x200, scoped, tag = 'prefetched SMEM operand 0']
  %s0 = inlined_call_operand.hbm [shape: s32[8], index: 0, kind: input, shape index: {}]
  %s1 = inlined_call_operand.hbm [shape: s32[8,8], index: 1, kind: input, shape index: {}]
  %s2 = inlined_call_operand.hbm [shape: s32[8,128], index: 2, kind: output, shape index: {}]
  %s3 = sld [smem:[#allocation0]]
  $region82: #{tpu_custom_call.1} parent=0
    _
  %s5 = ssub.s32 1, %s3
  %s6 = scalar_select 0, %s5, %s3
  %8 = dma.hbm_to_smem %s0, 16, [#allocation3], [#allocation2]
  %9 = dma.done [#allocation2], 16
  %10 = sfence
  $region1: #{tpu_custom_call.1} parent=0
    #allocation4 [shape = 'u8[4096]{0}', space=vmem, size = 0x1000, scoped, tag = 'input window, operand 1, single buffered']
    #allocation5 [shape = 's32[1]{0}', space=sflag, size = 0x4, scoped, tag = 'scoped memory for tpu_custom_call.1']
    #allocation6 [shape = 's32[1]{0}', space=sflag, size = 0x4, scoped, tag = 'scoped memory for tpu_custom_call.1']
    #allocation7 [shape = 'u8[4096]{0}', space=vmem, size = 0x1000, scoped, tag = 'output window, operand 0, single buffered']
    %11 = vsyncpa [#allocation5], 0
    %12 = vsyncpa [#allocation6], 0
    // Predicated region
    $region2: #{tpu_custom_call.1} parent=1 // pred_check
      _
    $region3: #{tpu_custom_call.1} parent=1 // pred_check_branch
      %14 = sbr.rel (0) target = $region5
    $region4: #{tpu_custom_call.1} parent=1 // pred_region
      %s16 = ssub.s32 128, 128
      %17 = vsyncadd [#allocation5], %s16
      %s19 = sshll.u32 [#allocation4], 4
      %s20 = int_to_ptr.vmem [resolvable:$true] %s19
      %22 = dma.hbm_to_vmem [thread:$0]  %s1, 128, %s20, [#allocation5]
    $region5: #{tpu_custom_call.1} parent=1 // pred_fallthru
      _
    // Predicated region
    $region6: #{tpu_custom_call.1} parent=1 // pred_check
      _
    $region7: #{tpu_custom_call.1} parent=1 // pred_check_branch
      %24 = sbr.rel (0) target = $region9
    $region8: #{tpu_custom_call.1} parent=1 // pred_region
      %25 = dma.done [#allocation5], 128
    $region9: #{tpu_custom_call.1} parent=1 // pred_fallthru
      _
    %s26 = smul.u32 0, 128
    %v27 = vlaneseq
    %v28 = vand.u32 %v27, 127
    %v29 = vstv %s26
    %v30 = vadd.s32 %v28, %v29
    %s31 = sld [smem:[#allocation3]]
    %p32 = scmp.ge.s32.totalorder %s26, %s31
    // Predicated region
    $region10: #{tpu_custom_call.1} parent=1 // pred_check
      %p33 = pneg %p32
    $region11: #{tpu_custom_call.1} parent=1 // pred_check_branch
      %35 = sbr.rel (%p33) target = $region13
    $region12: #{tpu_custom_call.1} parent=1 // pred_region
      %36 = vst [vmem:[#allocation7] sm:$0x1] 0
    $region13: #{tpu_custom_call.1} parent=1 // pred_fallthru
      _
    %p37 = scmp.lt.s32.totalorder %s26, %s31
    // Predicated region
    $region14: #{tpu_custom_call.1} parent=1 // pred_check
      %p38 = pneg %p37
    $region15: #{tpu_custom_call.1} parent=1 // pred_check_branch
      %40 = sbr.rel (%p38) target = $region17
    $region16: #{tpu_custom_call.1} parent=1 // pred_region
      %v41 = vld [vmem:[#allocation4] sm:$0xff]
      %42 = vset.pattern.permute.xlu0 0
      %43 = vperm.xlu0 %42, %v41
      %v44 = vpop.permute.xlu0 %43
      %vm45 = vcmp.le.s32.totalorder %v44, %v30
      %v46 = vsel %vm45, 1, 0
      %v47 = vrot.slane %v46, 4
      %v48 = vadd.s32 %v46, %v47
      %v49 = vrot.slane %v48, 2
      %v50 = vadd.s32 %v48, %v49
      %v51 = vrot.slane %v50, 1
      %v52 = vadd.s32 %v50, %v51
      %v53 = vstv %s31
      %vm54 = vcmp.lt.s32.totalorder %v30, %v53
      %v55 = vadd.s32 %v52, 1
      %v56 = vsel %vm54, %v55, 0
      %57 = vst [vmem:[#allocation7] sm:$0x1] %v56
    $region17: #{tpu_custom_call.1} parent=1 // pred_fallthru
      _
    %s58 = sld [smem:[#allocation3 + $0x1]]
    %p59 = scmp.ge.s32.totalorder %s26, %s58
    // Predicated region
    $region18: #{tpu_custom_call.1} parent=1 // pred_check
      %p60 = pneg %p59
    $region19: #{tpu_custom_call.1} parent=1 // pred_check_branch
      %62 = sbr.rel (%p60) target = $region21
    $region20: #{tpu_custom_call.1} parent=1 // pred_region
      %63 = vst [vmem:[#allocation7 + $0x1] sm:$0x1] 0
    $region21: #{tpu_custom_call.1} parent=1 // pred_fallthru
      _
    %p64 = scmp.lt.s32.totalorder %s26, %s58
    // Predicated region
    $region22: #{tpu_custom_call.1} parent=1 // pred_check
      %p65 = pneg %p64
    $region23: #{tpu_custom_call.1} parent=1 // pred_check_branch
      %67 = sbr.rel (%p65) target = $region25
    $region24: #{tpu_custom_call.1} parent=1 // pred_region
      %v68 = vld [vmem:[#allocation4] sm:$0xff]
      %69 = vset.pattern.permute.xlu0 1
      %70 = vperm.xlu0 %69, %v68
      %v71 = vpop.permute.xlu0 %70
      %vm72 = vcmp.le.s32.totalorder %v71, %v30
      %v73 = vsel %vm72, 1, 0
      %v74 = vrot.slane %v73, 4
      %v75 = vadd.s32 %v73, %v74
      %v76 = vrot.slane %v75, 2
      %v77 = vadd.s32 %v75, %v76
      %v78 = vrot.slane %v77, 1
      %v79 = vadd.s32 %v77, %v78
      %v80 = vstv %s58
      %vm81 = vcmp.lt.s32.totalorder %v30, %v80
      %v82 = vadd.s32 %v79, 1
      %v83 = vsel %vm81, %v82, 0
      %84 = vst [vmem:[#allocation7 + $0x1] sm:$0x1] %v83
    $region25: #{tpu_custom_call.1} parent=1 // pred_fallthru
      _
    %s85 = sld [smem:[#allocation3 + $0x2]]
    %p86 = scmp.ge.s32.totalorder %s26, %s85
    // Predicated region
    $region26: #{tpu_custom_call.1} parent=1 // pred_check
      %p87 = pneg %p86
    $region27: #{tpu_custom_call.1} parent=1 // pred_check_branch
      %89 = sbr.rel (%p87) target = $region29
    $region28: #{tpu_custom_call.1} parent=1 // pred_region
      %90 = vst [vmem:[#allocation7 + $0x2] sm:$0x1] 0
    $region29: #{tpu_custom_call.1} parent=1 // pred_fallthru
      _
    %p91 = scmp.lt.s32.totalorder %s26, %s85
    // Predicated region
    $region30: #{tpu_custom_call.1} parent=1 // pred_check
      %p92 = pneg %p91
    $region31: #{tpu_custom_call.1} parent=1 // pred_check_branch
      %94 = sbr.rel (%p92) target = $region33
    $region32: #{tpu_custom_call.1} parent=1 // pred_region
      %v95 = vld [vmem:[#allocation4] sm:$0xff]
      %96 = vset.pattern.permute.xlu0 2
      %97 = vperm.xlu0 %96, %v95
      %v98 = vpop.permute.xlu0 %97
      %vm99 = vcmp.le.s32.totalorder %v98, %v30
      %v100 = vsel %vm99, 1, 0
      %v101 = vrot.slane %v100, 4
      %v102 = vadd.s32 %v100, %v101
      %v103 = vrot.slane %v102, 2
      %v104 = vadd.s32 %v102, %v103
      %v105 = vrot.slane %v104, 1
      %v106 = vadd.s32 %v104, %v105
      %v107 = vstv %s85
      %vm108 = vcmp.lt.s32.totalorder %v30, %v107
      %v109 = vadd.s32 %v106, 1
      %v110 = vsel %vm108, %v109, 0
      %111 = vst [vmem:[#allocation7 + $0x2] sm:$0x1] %v110
    $region33: #{tpu_custom_call.1} parent=1 // pred_fallthru
      _
    %s112 = sld [smem:[#allocation3 + $0x3]]
    %p113 = scmp.ge.s32.totalorder %s26, %s112
    // Predicated region
    $region34: #{tpu_custom_call.1} parent=1 // pred_check
      %p114 = pneg %p113
    $region35: #{tpu_custom_call.1} parent=1 // pred_check_branch
      %116 = sbr.rel (%p114) target = $region37
    $region36: #{tpu_custom_call.1} parent=1 // pred_region
      %117 = vst [vmem:[#allocation7 + $0x3] sm:$0x1] 0
    $region37: #{tpu_custom_call.1} parent=1 // pred_fallthru
      _
    %p118 = scmp.lt.s32.totalorder %s26, %s112
    // Predicated region
    $region38: #{tpu_custom_call.1} parent=1 // pred_check
      %p119 = pneg %p118
    $region39: #{tpu_custom_call.1} parent=1 // pred_check_branch
      %121 = sbr.rel (%p119) target = $region41
    $region40: #{tpu_custom_call.1} parent=1 // pred_region
      %v122 = vld [vmem:[#allocation4] sm:$0xff]
      %123 = vset.pattern.permute.xlu0 3
      %124 = vperm.xlu0 %123, %v122
      %v125 = vpop.permute.xlu0 %124
      %vm126 = vcmp.le.s32.totalorder %v125, %v30
      %v127 = vsel %vm126, 1, 0
      %v128 = vrot.slane %v127, 4
      %v129 = vadd.s32 %v127, %v128
      %v130 = vrot.slane %v129, 2
      %v131 = vadd.s32 %v129, %v130
      %v132 = vrot.slane %v131, 1
      %v133 = vadd.s32 %v131, %v132
      %v134 = vstv %s112
      %vm135 = vcmp.lt.s32.totalorder %v30, %v134
      %v136 = vadd.s32 %v133, 1
      %v137 = vsel %vm135, %v136, 0
      %138 = vst [vmem:[#allocation7 + $0x3] sm:$0x1] %v137
    $region41: #{tpu_custom_call.1} parent=1 // pred_fallthru
      _
    %s139 = sld [smem:[#allocation3 + $0x4]]
    %p140 = scmp.ge.s32.totalorder %s26, %s139
    // Predicated region
    $region42: #{tpu_custom_call.1} parent=1 // pred_check
      %p141 = pneg %p140
    $region43: #{tpu_custom_call.1} parent=1 // pred_check_branch
      %143 = sbr.rel (%p141) target = $region45
    $region44: #{tpu_custom_call.1} parent=1 // pred_region
      %144 = vst [vmem:[#allocation7 + $0x4] sm:$0x1] 0
    $region45: #{tpu_custom_call.1} parent=1 // pred_fallthru
      _
    %p145 = scmp.lt.s32.totalorder %s26, %s139
    // Predicated region
    $region46: #{tpu_custom_call.1} parent=1 // pred_check
      %p146 = pneg %p145
    $region47: #{tpu_custom_call.1} parent=1 // pred_check_branch
      %148 = sbr.rel (%p146) target = $region49
    $region48: #{tpu_custom_call.1} parent=1 // pred_region
      %v149 = vld [vmem:[#allocation4] sm:$0xff]
      %150 = vset.pattern.permute.xlu0 4
      %151 = vperm.xlu0 %150, %v149
      %v152 = vpop.permute.xlu0 %151
      %vm153 = vcmp.le.s32.totalorder %v152, %v30
      %v154 = vsel %vm153, 1, 0
      %v155 = vrot.slane %v154, 4
      %v156 = vadd.s32 %v154, %v155
      %v157 = vrot.slane %v156, 2
      %v158 = vadd.s32 %v156, %v157
      %v159 = vrot.slane %v158, 1
      %v160 = vadd.s32 %v158, %v159
      %v161 = vstv %s139
      %vm162 = vcmp.lt.s32.totalorder %v30, %v161
      %v163 = vadd.s32 %v160, 1
      %v164 = vsel %vm162, %v163, 0
      %165 = vst [vmem:[#allocation7 + $0x4] sm:$0x1] %v164
    $region49: #{tpu_custom_call.1} parent=1 // pred_fallthru
      _
    %s166 = sld [smem:[#allocation3 + $0x5]]
    %p167 = scmp.ge.s32.totalorder %s26, %s166
    // Predicated region
    $region50: #{tpu_custom_call.1} parent=1 // pred_check
      %p168 = pneg %p167
    $region51: #{tpu_custom_call.1} parent=1 // pred_check_branch
      %170 = sbr.rel (%p168) target = $region53
    $region52: #{tpu_custom_call.1} parent=1 // pred_region
      %171 = vst [vmem:[#allocation7 + $0x5] sm:$0x1] 0
    $region53: #{tpu_custom_call.1} parent=1 // pred_fallthru
      _
    %p172 = scmp.lt.s32.totalorder %s26, %s166
    // Predicated region
    $region54: #{tpu_custom_call.1} parent=1 // pred_check
      %p173 = pneg %p172
    $region55: #{tpu_custom_call.1} parent=1 // pred_check_branch
      %175 = sbr.rel (%p173) target = $region57
    $region56: #{tpu_custom_call.1} parent=1 // pred_region
      %v176 = vld [vmem:[#allocation4] sm:$0xff]
      %177 = vset.pattern.permute.xlu0 5
      %178 = vperm.xlu0 %177, %v176
      %v179 = vpop.permute.xlu0 %178
      %vm180 = vcmp.le.s32.totalorder %v179, %v30
      %v181 = vsel %vm180, 1, 0
      %v182 = vrot.slane %v181, 4
      %v183 = vadd.s32 %v181, %v182
      %v184 = vrot.slane %v183, 2
      %v185 = vadd.s32 %v183, %v184
      %v186 = vrot.slane %v185, 1
      %v187 = vadd.s32 %v185, %v186
      %v188 = vstv %s166
      %vm189 = vcmp.lt.s32.totalorder %v30, %v188
      %v190 = vadd.s32 %v187, 1
      %v191 = vsel %vm189, %v190, 0
      %192 = vst [vmem:[#allocation7 + $0x5] sm:$0x1] %v191
    $region57: #{tpu_custom_call.1} parent=1 // pred_fallthru
      _
    %s193 = sld [smem:[#allocation3 + $0x6]]
    %p194 = scmp.ge.s32.totalorder %s26, %s193
    // Predicated region
    $region58: #{tpu_custom_call.1} parent=1 // pred_check
      %p195 = pneg %p194
    $region59: #{tpu_custom_call.1} parent=1 // pred_check_branch
      %197 = sbr.rel (%p195) target = $region61
    $region60: #{tpu_custom_call.1} parent=1 // pred_region
      %198 = vst [vmem:[#allocation7 + $0x6] sm:$0x1] 0
    $region61: #{tpu_custom_call.1} parent=1 // pred_fallthru
      _
    %p199 = scmp.lt.s32.totalorder %s26, %s193
    // Predicated region
    $region62: #{tpu_custom_call.1} parent=1 // pred_check
      %p200 = pneg %p199
    $region63: #{tpu_custom_call.1} parent=1 // pred_check_branch
      %202 = sbr.rel (%p200) target = $region65
    $region64: #{tpu_custom_call.1} parent=1 // pred_region
      %v203 = vld [vmem:[#allocation4] sm:$0xff]
      %204 = vset.pattern.permute.xlu0 6
      %205 = vperm.xlu0 %204, %v203
      %v206 = vpop.permute.xlu0 %205
      %vm207 = vcmp.le.s32.totalorder %v206, %v30
      %v208 = vsel %vm207, 1, 0
      %v209 = vrot.slane %v208, 4
      %v210 = vadd.s32 %v208, %v209
      %v211 = vrot.slane %v210, 2
      %v212 = vadd.s32 %v210, %v211
      %v213 = vrot.slane %v212, 1
      %v214 = vadd.s32 %v212, %v213
      %v215 = vstv %s193
      %vm216 = vcmp.lt.s32.totalorder %v30, %v215
      %v217 = vadd.s32 %v214, 1
      %v218 = vsel %vm216, %v217, 0
      %219 = vst [vmem:[#allocation7 + $0x6] sm:$0x1] %v218
    $region65: #{tpu_custom_call.1} parent=1 // pred_fallthru
      _
    %s220 = sld [smem:[#allocation3 + $0x7]]
    %p221 = scmp.ge.s32.totalorder %s26, %s220
    // Predicated region
    $region66: #{tpu_custom_call.1} parent=1 // pred_check
      %p222 = pneg %p221
    $region67: #{tpu_custom_call.1} parent=1 // pred_check_branch
      %224 = sbr.rel (%p222) target = $region69
    $region68: #{tpu_custom_call.1} parent=1 // pred_region
      %225 = vst [vmem:[#allocation7 + $0x7] sm:$0x1] 0
    $region69: #{tpu_custom_call.1} parent=1 // pred_fallthru
      _
    %p226 = scmp.lt.s32.totalorder %s26, %s220
    // Predicated region
    $region70: #{tpu_custom_call.1} parent=1 // pred_check
      %p227 = pneg %p226
    $region71: #{tpu_custom_call.1} parent=1 // pred_check_branch
      %229 = sbr.rel (%p227) target = $region73
    $region72: #{tpu_custom_call.1} parent=1 // pred_region
      %v230 = vld [vmem:[#allocation4] sm:$0xff]
      %231 = vset.pattern.permute.xlu0 7
      %232 = vperm.xlu0 %231, %v230
      %v233 = vpop.permute.xlu0 %232
      %vm234 = vcmp.le.s32.totalorder %v233, %v30
      %v235 = vsel %vm234, 1, 0
      %v236 = vrot.slane %v235, 4
      %v237 = vadd.s32 %v235, %v236
      %v238 = vrot.slane %v237, 2
      %v239 = vadd.s32 %v237, %v238
      %v240 = vrot.slane %v239, 1
      %v241 = vadd.s32 %v239, %v240
      %v242 = vstv %s220
      %vm243 = vcmp.lt.s32.totalorder %v30, %v242
      %v244 = vadd.s32 %v241, 1
      %v245 = vsel %vm243, %v244, 0
      %246 = vst [vmem:[#allocation7 + $0x7] sm:$0x1] %v245
    $region73: #{tpu_custom_call.1} parent=1 // pred_fallthru
      _
    // Predicated region
    $region74: #{tpu_custom_call.1} parent=1 // pred_check
      _
    $region75: #{tpu_custom_call.1} parent=1 // pred_check_branch
      %248 = sbr.rel (0) target = $region77
    $region76: #{tpu_custom_call.1} parent=1 // pred_region
      %s250 = ssub.s32 128, 128
      %251 = vsyncadd [#allocation6], %s250
      %s253 = sshll.u32 [#allocation7], 4
      %s254 = int_to_ptr.vmem [resolvable:$true] %s253
      %256 = dma.vmem_to_hbm [thread:$0]  %s254, 128, %s2, [#allocation6]
    $region77: #{tpu_custom_call.1} parent=1 // pred_fallthru
      _
    // Predicated region
    $region78: #{tpu_custom_call.1} parent=1 // pred_check
      _
    $region79: #{tpu_custom_call.1} parent=1 // pred_check_branch
      %258 = sbr.rel (0) target = $region81
    $region80: #{tpu_custom_call.1} parent=1 // pred_region
      %259 = dma.done [#allocation6], 128
    $region81: #{tpu_custom_call.1} parent=1 // pred_fallthru
      _
    %260 = vsyncpa [#allocation5], 1
    %261 = vsyncpa [#allocation6], 1

</llo_original>
